<compile_context>
chip_gen: v6e
topology: v6e:2x2x1
jax: 0.10.0
libtpu: 0.0.40
codegen_flags: <defaults>
</compile_context>

<pallas_src>
import math
from typing import NamedTuple

import jax
import jax.numpy as jnp
from jax.experimental import pallas as pl
from jax.experimental.pallas import tpu as pltpu

MIN_NORM = 1e-15
PROJ_EPS = 1e-5                      # ball boundary epsilon for project()
C = 1.0                              # curvature (ball.c == 1.0)
SQRT_C = math.sqrt(C)
MAXNORM = (1.0 - PROJ_EPS) / SQRT_C

_LANE = 128                          # lane width (last-dim tiling)


def _round_up(x, m):
    return ((x + m - 1) // m) * m


# ---------------------------------------------------------------------------
# hardware queries (safe fallbacks if the introspection API is unavailable)
# ---------------------------------------------------------------------------
def _vmem_capacity_bytes():
    try:
        cap = int(pltpu.get_tpu_info().vmem_capacity_bytes)
        if cap > 0:
            return cap
    except Exception:
        pass
    return 64 * 2**20        # conservative (v7x-sized) fallback — safe everywhere


def _num_tensorcores():
    try:
        info = pltpu.get_tpu_info()
        for attr in ("num_cores", "num_tensorcores", "tensorcores_per_chip",
                     "cores_per_chip", "core_count"):
            v = getattr(info, attr, None)
            if isinstance(v, int) and v > 0:
                return v
    except Exception:
        pass
    return 1                 # v5e / v6e have 1 TC per chip; safe default


# ---------------------------------------------------------------------------
# hyperbolic helpers (traceable; used for host-side glue and the reference)
# ---------------------------------------------------------------------------
def _artanh(x):
    x = jnp.clip(x, -1.0 + 1e-7, 1.0 - 1e-7)
    return 0.5 * (jnp.log1p(x) - jnp.log1p(-x))


def _project(x, c=C):
    """Clamp points back inside the Poincare ball of curvature c."""
    sqrt_c = jnp.sqrt(c)
    norm = jnp.maximum(jnp.sqrt(jnp.sum(x * x, axis=-1, keepdims=True)), MIN_NORM)
    maxnorm = (1.0 - PROJ_EPS) / sqrt_c
    projected = x / norm * maxnorm
    return jnp.where(norm > maxnorm, projected, x)


def _expmap0(u, c=C):
    sqrt_c = jnp.sqrt(c)
    u_norm = jnp.maximum(jnp.sqrt(jnp.sum(u * u, axis=-1, keepdims=True)), MIN_NORM)
    return jnp.tanh(sqrt_c * u_norm) * u / (sqrt_c * u_norm)


def _mobius_add(x, y, c=C):
    x2 = jnp.sum(x * x, axis=-1, keepdims=True)
    y2 = jnp.sum(y * y, axis=-1, keepdims=True)
    xy = jnp.sum(x * y, axis=-1, keepdims=True)
    num = (1.0 + 2.0 * c * xy + c * y2) * x + (1.0 - c * x2) * y
    denom = 1.0 + 2.0 * c * xy + c * c * x2 * y2
    return num / jnp.maximum(denom, MIN_NORM)


# ---------------------------------------------------------------------------
# Pallas kernel: per row tile
#   mv  = mobius_matvec(W, x)   ->   res = project(mv)
#   res = project(mobius_add(res, hyp_bias))
# All scales are folded into narrow (tm,1) coefficients a, b applied once:
#   out = a * mx + b * hyp_bias
# ---------------------------------------------------------------------------
def hyp_linear_kernel(y2_ref, x_ref, wt_ref, hb_ref, o_ref):
    x = x_ref[...]                                        # single load of the row tile
    xf = x.astype(jnp.float32)
    hb = hb_ref[...].astype(jnp.float32)                  # (1, out_f)  hyperbolic bias
    y2 = y2_ref[0]                                        # scalar (SMEM): ||hyp_bias||^2

    # --- mobius_matvec matmul: bf16 MXU operands, f32 accumulation -----------
    mx = jnp.dot(x.astype(jnp.bfloat16), wt_ref[...],
                 preferred_element_type=jnp.float32)      # (tm, out_f)

    # --- the only remaining full-width elementwise work -----------------------
    x2 = jnp.sum(xf * xf, axis=-1, keepdims=True)         # (tm, 1)
    mx2 = jnp.sum(mx * mx, axis=-1, keepdims=True)        # (tm, 1)
    mxh = jnp.sum(mx * hb, axis=-1, keepdims=True)        # (tm, 1)  <mx, hyp_bias>

    # --- everything below is narrow (tm, 1) algebra ---------------------------
    x_norm = jnp.sqrt(jnp.maximum(x2, MIN_NORM * MIN_NORM))
    mx_norm = jnp.sqrt(jnp.maximum(mx2, MIN_NORM * MIN_NORM))

    # mobius_matvec scale: tanh(||Mx||/||x|| * artanh(sqrt(c)||x||)) / (sqrt(c)||Mx||)
    s_mv = jnp.tanh(mx_norm / x_norm * _artanh(SQRT_C * x_norm)) / (SQRT_C * mx_norm)
    # zero-row test reuses mx2 (no extra full-width abs reduce).
    # TODO(synk): rows of subnormal magnitude (~1e-20) underflow mx*mx and are
    # treated as zero rows; matches the reference for any realistic input.
    s_mv = jnp.where(mx2 == 0.0, 0.0, s_mv)

    # project(mobius_matvec): fold the clip into the same scale; the norm is
    # carried analytically (||s*mx|| = |s|*||mx||), no full-width square.
    res_norm = jnp.abs(s_mv) * mx_norm
    s_p1 = jnp.where(res_norm > MAXNORM,
                     MAXNORM / jnp.maximum(res_norm, MIN_NORM), 1.0)
    s_tot = s_mv * s_p1                                   # res = s_tot * mx
    res_norm = res_norm * s_p1
    res2 = res_norm * res_norm                            # ||project(mv)||^2

    # mobius_add(res, hyp_bias)  ->  out = a * mx + b * hb  with narrow a, b
    xy = s_tot * mxh                                      # <res, hyp_bias>
    denom = jnp.maximum(1.0 + 2.0 * C * xy + (C * C) * res2 * y2, MIN_NORM)
    r = 1.0 / denom                                       # exact (tm,1) divide
    a = (1.0 + 2.0 * C * xy + C * y2) * s_tot * r
    b = (1.0 - C * res2) * r

    # final project: squared norm computed analytically (no sum(out*out));
    # exact divide so the result is guaranteed to stay inside the ball.
    out2 = a * a * mx2 + 2.0 * (a * b) * mxh + b * b * y2
    out_norm = jnp.sqrt(jnp.maximum(out2, MIN_NORM * MIN_NORM))
    s_p2 = jnp.where(out_norm > MAXNORM, MAXNORM / out_norm, 1.0)
    a = a * s_p2
    b = b * s_p2

    # single combined full-width application of all the folded scales.
    o_ref[...] = (a * mx + b * hb).astype(o_ref.dtype)


# ---------------------------------------------------------------------------
# parameter setup (once per layer) + forward wrapper
# ---------------------------------------------------------------------------
class HypLinearParams(NamedTuple):
    wt: jax.Array        # (in_f_pad, out_f_pad) bf16: weight.T, zero-padded
    hb: jax.Array        # (1, out_f_pad) f32: project(expmap0(bias)), zero-padded
    y2: jax.Array        # (1,) f32: sum(hb*hb), passed as an SMEM scalar
    in_features: int
    out_features: int


def prepare_hyp_linear_params(weight, bias):
    """One-time per-layer precompute — do NOT redo this every forward call."""
    out_f, in_f = weight.shape
    in_f_p = _round_up(in_f, _LANE)
    out_f_p = _round_up(out_f, _LANE)
    # TODO(synk): optional fp8 weight + per-column scale path for v7x (halves
    # resident VMEM again and doubles MXU throughput); bf16 kept for accuracy.
    wt = jnp.pad(weight.astype(jnp.bfloat16).T,
                 ((0, in_f_p - in_f), (0, out_f_p - out_f)))
    hb = _project(_expmap0(bias.astype(jnp.float32)))[None, :]       # (1, out_f)
    y2 = jnp.sum(hb * hb, axis=-1).astype(jnp.float32)               # (1,)
    hb = jnp.pad(hb, ((0, 0), (0, out_f_p - out_f)))
    return HypLinearParams(wt, hb, y2, in_f, out_f)


def _kernel_vmem_bytes(tm, in_f_p, out_f_p, x_isz, o_isz, resident_bufs):
    """Pipeline buffers + in-kernel f32 temporaries (review: count temps too)."""
    return (2 * tm * in_f_p * x_isz                # x row tile (double-buffered)
            + resident_bufs * in_f_p * out_f_p * 2  # bf16 weight (1x if Buffered(1))
            + resident_bufs * out_f_p * 4           # hyperbolic bias row (f32)
            + 2 * tm * out_f_p * o_isz              # output row tile (double-buffered)
            + 3 * tm * out_f_p * 4                  # f32 temporaries: mx, mx*hb, out
            + tm * in_f_p * 6)                      # f32 + bf16 in-kernel copies of x


def _hyp_linear_call(xs, params: HypLinearParams, tm_req, out_dtype, single_buffer):
    N, in_f = xs.shape
    assert in_f == params.in_features
    in_f_p, out_f_p = params.wt.shape
    out_f = params.out_features
    out_dtype = xs.dtype if out_dtype is None else jnp.dtype(out_dtype)

    x_isz = xs.dtype.itemsize
    o_isz = jnp.dtype(out_dtype).itemsize
    sub = 16 if min(x_isz, o_isz) < 4 else 8      # (16,128) min tile for bf16 blocks
    resident_bufs = 1 if single_buffer else 2

    cap = _vmem_capacity_bytes()
    budget = (cap * 7) // 10      # generation-aware: ~45 MiB on v7x, ~90 MiB on v5e/v6e
    n_tc = _num_tensorcores()

    # ---- row-tile selection --------------------------------------------------
    tm_eff = _round_up(max(sub, min(int(tm_req), _round_up(N, sub))), sub)
    if N >= 128:
        # full MXU M-passes and unmasked output-store tiles (no vst.msk)
        tm_eff = _round_up(tm_eff, 128)
    if n_tc >= 2 and N >= n_tc * 256:
        # >= n_tc row tiles so the "parallel" axis shards across TensorCores (v7x)
        tm_eff = min(tm_eff, _round_up(-(-N // n_tc), 256))
    # shrink until the real footprint (pipeline buffers + f32 temporaries) fits
    while tm_eff > sub and _kernel_vmem_bytes(
            tm_eff, in_f_p, out_f_p, x_isz, o_isz, resident_bufs) > budget:
        tm_eff = max(sub, _round_up(tm_eff // 2, sub))

    n_pad = _round_up(N, tm_eff)
    grid = n_pad // tm_eff

    # zero-pad rows (handles N % tm != 0; padded rows are sliced off afterwards)
    # and features (lane-dense 128-wide tiles; zero feature padding is exact).
    xs_p = jnp.pad(xs, ((0, n_pad - N), (0, in_f_p - in_f)))

    needed = _kernel_vmem_bytes(tm_eff, in_f_p, out_f_p, x_isz, o_isz, resident_bufs)
    vmem_limit = int(min(cap - (4 << 20), max(needed + (needed >> 2), 16 << 20)))

    resident_kw = {"pipeline_mode": pl.Buffered(1)} if single_buffer else {}

    out = pl.pallas_call(
        hyp_linear_kernel,
        out_shape=jax.ShapeDtypeStruct((n_pad, out_f_p), out_dtype),
        grid_spec=pl.GridSpec(
            grid=(grid,),
            in_specs=[
                pl.BlockSpec(memory_space=pltpu.MemorySpace.SMEM),    # y2 scalar
                pl.BlockSpec((tm_eff, in_f_p), lambda i: (i, 0)),     # x row tile
                pl.BlockSpec((in_f_p, out_f_p), lambda i: (0, 0),     # weight (resident)
                             **resident_kw),
                pl.BlockSpec((1, out_f_p), lambda i: (0, 0),          # hyperbolic bias
                             **resident_kw),
            ],
            out_specs=pl.BlockSpec((tm_eff, out_f_p), lambda i: (i, 0)),
        ),
        compiler_params=pltpu.CompilerParams(
            dimension_semantics=("parallel",),
            vmem_limit_bytes=vmem_limit,
        ),
    )(params.y2, xs_p, params.wt, params.hb)
    return out[:N, :out_f]


_RESIDENT_SINGLE_BUFFER = None   # resolved on first call: is pl.Buffered(1) usable?


def hyp_linear(xs, params: HypLinearParams, *, tm=512, out_dtype=None):
    """xs: (N, in_features) -> (N, out_features)."""
    global _RESIDENT_SINGLE_BUFFER
    if _RESIDENT_SINGLE_BUFFER is None:
        if hasattr(pl, "Buffered"):
            try:
                out = _hyp_linear_call(xs, params, tm, out_dtype, single_buffer=True)
                jax.block_until_ready(out)
                _RESIDENT_SINGLE_BUFFER = True
                return out
            except Exception:
                _RESIDENT_SINGLE_BUFFER = False   # fall back to double-buffered specs
        else:
            _RESIDENT_SINGLE_BUFFER = False
    return _hyp_linear_call(xs, params, tm, out_dtype,
                            single_buffer=_RESIDENT_SINGLE_BUFFER)


# ---------------------------------------------------------------------------
# pure-JAX reference (same bf16 matmul, exact divides) for a sanity check
# ---------------------------------------------------------------------------
def hyp_linear_ref(xs, weight, bias):
    x = xs.astype(jnp.float32)
    mx = jnp.dot(x.astype(jnp.bfloat16), weight.astype(jnp.bfloat16).T,
                 preferred_element_type=jnp.float32)
    x_norm = jnp.maximum(jnp.linalg.norm(x, axis=-1, keepdims=True), MIN_NORM)
    mx_norm = jnp.maximum(jnp.linalg.norm(mx, axis=-1, keepdims=True), MIN_NORM)
    res_c = (jnp.tanh((mx_norm / x_norm) * _artanh(SQRT_C * x_norm))
             * mx / (mx_norm * SQRT_C))
    res = jnp.where(jnp.sum(jnp.abs(mx), -1, keepdims=True) == 0.0, 0.0, res_c)
    res = _project(res)
    hb = _project(_expmap0(bias.astype(jnp.float32)))
    res = _project(_mobius_add(res, jnp.broadcast_to(hb, res.shape)))
    return res.astype(xs.dtype)


if __name__ == "__main__":
    key = jax.random.PRNGKey(0)
    N, in_f, out_f = 16, 32, 32

    kx, kw, kb = jax.random.split(key, 3)

    # input node features: points inside the unit Poincare ball
    xs = _project(0.1 * jax.random.normal(kx, (N, in_f), dtype=jnp.float32))

    # weight per HypLinear.reset_parameters: xavier_uniform(gain=sqrt(2)).
    gain = math.sqrt(2.0)
    limit = gain * math.sqrt(6.0 / (in_f + out_f))
    weight = jax.random.uniform(kw, (out_f, in_f), jnp.float32, -limit, limit)
    # reset_parameters() zeroes the bias; use a small non-zero (learned-like)
    # bias here so the expmap0 / mobius_add path is actually exercised.
    bias = 0.05 * jax.random.normal(kb, (out_f,), dtype=jnp.float32)
    # TODO(synk): F.dropout on the weight is training-mode only; the module is
    # run in eval mode here, so dropout is the identity.

    params = prepare_hyp_linear_params(weight, bias)    # once per layer
    out = jax.block_until_ready(hyp_linear(xs, params))
    ref = hyp_linear_ref(xs, weight, bias)
    assert out.shape == (N, out_f)
    # bf16 MXU operands loosen precision slightly vs an all-f32 path.
    assert bool(jnp.allclose(out, ref, atol=3e-3, rtol=3e-2)), (
        float(jnp.max(jnp.abs(out - ref))))

    # ragged row count (exercises zero-row padding + the cached spec path)
    xs2 = xs[:13]
    out2 = jax.block_until_ready(hyp_linear(xs2, params))
    ref2 = hyp_linear_ref(xs2, weight, bias)
    assert out2.shape == (13, out_f)
    assert bool(jnp.allclose(out2, ref2, atol=3e-3, rtol=3e-2)), (
        float(jnp.max(jnp.abs(out2 - ref2))))

    print("KERNEL_OK")
</pallas_src>

<mosaic_0001>
module attributes {stable_mosaic.version = 11 : i64} {
  func.func @hyp_linear_kernel(%arg0: i32, %arg1: memref<1xf32, #tpu.memory_space<smem>>, %arg2: memref<16x128xf32, #tpu.memory_space<vmem>>, %arg3: memref<128x128xbf16, #tpu.memory_space<vmem>>, %arg4: memref<1x128xf32, #tpu.memory_space<vmem>>, %arg5: memref<16x128xf32, #tpu.memory_space<vmem>>) attributes {dimension_semantics = [#tpu.dimension_semantics<parallel>], iteration_bounds = array<i64: 1>, scalar_prefetch = 0 : i64, scratch_operands = 0 : i64, tpu.core_type = #tpu.core_type<tc>, window_params = [{transform_indices = @transform_0, window_bounds = array<i64: 1>}, {transform_indices = @transform_1, window_bounds = array<i64: 16, 128>}, {pipeline_mode = #tpu.pipeline_mode<synchronous>, transform_indices = @transform_2, window_bounds = array<i64: 128, 128>}, {pipeline_mode = #tpu.pipeline_mode<synchronous>, transform_indices = @transform_3, window_bounds = array<i64: 1, 128>}, {transform_indices = @transform_4, window_bounds = array<i64: 16, 128>}]} {
    %c0 = arith.constant 0 : index
    %c0_0 = arith.constant 0 : index
    %0 = vector.load %arg2[%c0, %c0_0] : memref<16x128xf32, #tpu.memory_space<vmem>>, vector<16x128xf32>
    %c0_1 = arith.constant 0 : index
    %c0_2 = arith.constant 0 : index
    %1 = vector.load %arg4[%c0_1, %c0_2] : memref<1x128xf32, #tpu.memory_space<vmem>>, vector<1x128xf32>
    %c0_3 = arith.constant 0 : index
    %2 = memref.load %arg1[%c0_3] : memref<1xf32, #tpu.memory_space<smem>>
    %3 = arith.truncf %0 : vector<16x128xf32> to vector<16x128xbf16>
    %c0_4 = arith.constant 0 : index
    %c0_5 = arith.constant 0 : index
    %4 = vector.load %arg3[%c0_4, %c0_5] : memref<128x128xbf16, #tpu.memory_space<vmem>>, vector<128x128xbf16>
    %cst = arith.constant dense<0.000000e+00> : vector<16x128xf32>
    %5 = tpu.matmul %3, %4, %cst {dimension_numbers = #tpu.dot_dimension_numbers<[1], [0], [0], [1], [0, 0, 1, 1], [], []>} : vector<16x128xbf16>, vector<128x128xbf16>, vector<16x128xf32> -> vector<16x128xf32>
    %6 = arith.mulf %0, %0 : vector<16x128xf32>
    %cst_6 = arith.constant dense<0.000000e+00> : vector<16xf32>
    %7 = vector.multi_reduction <add>, %6, %cst_6 [1] : vector<16x128xf32> to vector<16xf32>
    %8 = vector.shape_cast %7 : vector<16xf32> to vector<16x1xf32>
    %9 = arith.mulf %5, %5 : vector<16x128xf32>
    %cst_7 = arith.constant dense<0.000000e+00> : vector<16xf32>
    %10 = vector.multi_reduction <add>, %9, %cst_7 [1] : vector<16x128xf32> to vector<16xf32>
    %11 = vector.shape_cast %10 : vector<16xf32> to vector<16x1xf32>
    %12 = vector.broadcast %1 : vector<1x128xf32> to vector<16x128xf32>
    %13 = arith.mulf %5, %12 : vector<16x128xf32>
    %cst_8 = arith.constant dense<0.000000e+00> : vector<16xf32>
    %14 = vector.multi_reduction <add>, %13, %cst_8 [1] : vector<16x128xf32> to vector<16xf32>
    %15 = vector.shape_cast %14 : vector<16xf32> to vector<16x1xf32>
    %cst_9 = arith.constant 1.000000e-30 : f32
    %16 = vector.broadcast %cst_9 : f32 to vector<16x1xf32>
    %17 = arith.maximumf %8, %16 : vector<16x1xf32>
    %18 = math.sqrt %17 : vector<16x1xf32>
    %cst_10 = arith.constant 1.000000e-30 : f32
    %19 = vector.broadcast %cst_10 : f32 to vector<16x1xf32>
    %20 = arith.maximumf %11, %19 : vector<16x1xf32>
    %21 = math.sqrt %20 : vector<16x1xf32>
    %22 = arith.divf %21, %18 : vector<16x1xf32>
    %cst_11 = arith.constant 1.000000e+00 : f32
    %23 = vector.broadcast %cst_11 : f32 to vector<16x1xf32>
    %24 = arith.mulf %23, %18 : vector<16x1xf32>
    %cst_12 = arith.constant -0.99999988 : f32
    %cst_13 = arith.constant 0.99999988 : f32
    %25 = vector.broadcast %cst_12 : f32 to vector<16x1xf32>
    %26 = arith.maximumf %25, %24 : vector<16x1xf32>
    %27 = vector.broadcast %cst_13 : f32 to vector<16x1xf32>
    %28 = arith.minimumf %27, %26 : vector<16x1xf32>
    %29 = math.log1p %28 : vector<16x1xf32>
    %cst_14 = arith.constant 0.000000e+00 : f32
    %30 = vector.broadcast %cst_14 : f32 to vector<16x1xf32>
    %31 = arith.subf %30, %28 : vector<16x1xf32>
    %32 = math.log1p %31 : vector<16x1xf32>
    %33 = arith.subf %29, %32 : vector<16x1xf32>
    %cst_15 = arith.constant 5.000000e-01 : f32
    %34 = vector.broadcast %cst_15 : f32 to vector<16x1xf32>
    %35 = arith.mulf %34, %33 : vector<16x1xf32>
    %36 = arith.mulf %22, %35 : vector<16x1xf32>
    %37 = math.tanh %36 : vector<16x1xf32>
    %cst_16 = arith.constant 1.000000e+00 : f32
    %38 = vector.broadcast %cst_16 : f32 to vector<16x1xf32>
    %39 = arith.mulf %38, %21 : vector<16x1xf32>
    %40 = arith.divf %37, %39 : vector<16x1xf32>
    %cst_17 = arith.constant 0.000000e+00 : f32
    %41 = vector.broadcast %cst_17 : f32 to vector<16x1xf32>
    %42 = arith.cmpf oeq, %11, %41 : vector<16x1xf32>
    %cst_18 = arith.constant 0.000000e+00 : f32
    %43 = vector.broadcast %cst_18 : f32 to vector<16x1xf32>
    %44 = arith.select %42, %43, %40 : vector<16x1xi1>, vector<16x1xf32>
    %45 = math.absf %44 : vector<16x1xf32>
    %46 = arith.mulf %45, %21 : vector<16x1xf32>
    %cst_19 = arith.constant 0.999989986 : f32
    %47 = vector.broadcast %cst_19 : f32 to vector<16x1xf32>
    %48 = arith.cmpf ogt, %46, %47 : vector<16x1xf32>
    %cst_20 = arith.constant 1.000000e-15 : f32
    %49 = vector.broadcast %cst_20 : f32 to vector<16x1xf32>
    %50 = arith.maximumf %46, %49 : vector<16x1xf32>
    %cst_21 = arith.constant 0.999989986 : f32
    %51 = vector.broadcast %cst_21 : f32 to vector<16x1xf32>
    %52 = arith.divf %51, %50 : vector<16x1xf32>
    %cst_22 = arith.constant 1.000000e+00 : f32
    %53 = vector.broadcast %cst_22 : f32 to vector<16x1xf32>
    %54 = arith.select %48, %52, %53 : vector<16x1xi1>, vector<16x1xf32>
    %55 = arith.mulf %44, %54 : vector<16x1xf32>
    %56 = arith.mulf %46, %54 : vector<16x1xf32>
    %57 = arith.mulf %56, %56 : vector<16x1xf32>
    %58 = arith.mulf %55, %15 : vector<16x1xf32>
    %cst_23 = arith.constant 2.000000e+00 : f32
    %59 = vector.broadcast %cst_23 : f32 to vector<16x1xf32>
    %60 = arith.mulf %59, %58 : vector<16x1xf32>
    %cst_24 = arith.constant 1.000000e+00 : f32
    %61 = vector.broadcast %cst_24 : f32 to vector<16x1xf32>
    %62 = arith.addf %61, %60 : vector<16x1xf32>
    %cst_25 = arith.constant 1.000000e+00 : f32
    %63 = vector.broadcast %cst_25 : f32 to vector<16x1xf32>
    %64 = arith.mulf %63, %57 : vector<16x1xf32>
    %65 = vector.broadcast %2 : f32 to vector<16x1xf32>
    %66 = arith.mulf %64, %65 : vector<16x1xf32>
    %67 = arith.addf %62, %66 : vector<16x1xf32>
    %cst_26 = arith.constant 1.000000e-15 : f32
    %68 = vector.broadcast %cst_26 : f32 to vector<16x1xf32>
    %69 = arith.maximumf %67, %68 : vector<16x1xf32>
    %cst_27 = arith.constant 1.000000e+00 : f32
    %70 = vector.broadcast %cst_27 : f32 to vector<16x1xf32>
    %71 = arith.divf %70, %69 : vector<16x1xf32>
    %cst_28 = arith.constant 2.000000e+00 : f32
    %72 = vector.broadcast %cst_28 : f32 to vector<16x1xf32>
    %73 = arith.mulf %72, %58 : vector<16x1xf32>
    %cst_29 = arith.constant 1.000000e+00 : f32
    %74 = vector.broadcast %cst_29 : f32 to vector<16x1xf32>
    %75 = arith.addf %74, %73 : vector<16x1xf32>
    %cst_30 = arith.constant 1.000000e+00 : f32
    %76 = arith.mulf %cst_30, %2 : f32
    %77 = vector.broadcast %76 : f32 to vector<16x1xf32>
    %78 = arith.addf %75, %77 : vector<16x1xf32>
    %79 = arith.mulf %78, %55 : vector<16x1xf32>
    %80 = arith.mulf %79, %71 : vector<16x1xf32>
    %cst_31 = arith.constant 1.000000e+00 : f32
    %81 = vector.broadcast %cst_31 : f32 to vector<16x1xf32>
    %82 = arith.mulf %81, %57 : vector<16x1xf32>
    %cst_32 = arith.constant 1.000000e+00 : f32
    %83 = vector.broadcast %cst_32 : f32 to vector<16x1xf32>
    %84 = arith.subf %83, %82 : vector<16x1xf32>
    %85 = arith.mulf %84, %71 : vector<16x1xf32>
    %86 = arith.mulf %80, %80 : vector<16x1xf32>
    %87 = arith.mulf %86, %11 : vector<16x1xf32>
    %88 = arith.mulf %80, %85 : vector<16x1xf32>
    %cst_33 = arith.constant 2.000000e+00 : f32
    %89 = vector.broadcast %cst_33 : f32 to vector<16x1xf32>
    %90 = arith.mulf %89, %88 : vector<16x1xf32>
    %91 = arith.mulf %90, %15 : vector<16x1xf32>
    %92 = arith.addf %87, %91 : vector<16x1xf32>
    %93 = arith.mulf %85, %85 : vector<16x1xf32>
    %94 = vector.broadcast %2 : f32 to vector<16x1xf32>
    %95 = arith.mulf %93, %94 : vector<16x1xf32>
    %96 = arith.addf %92, %95 : vector<16x1xf32>
    %cst_34 = arith.constant 1.000000e-30 : f32
    %97 = vector.broadcast %cst_34 : f32 to vector<16x1xf32>
    %98 = arith.maximumf %96, %97 : vector<16x1xf32>
    %99 = math.sqrt %98 : vector<16x1xf32>
    %cst_35 = arith.constant 0.999989986 : f32
    %100 = vector.broadcast %cst_35 : f32 to vector<16x1xf32>
    %101 = arith.cmpf ogt, %99, %100 : vector<16x1xf32>
    %cst_36 = arith.constant 0.999989986 : f32
    %102 = vector.broadcast %cst_36 : f32 to vector<16x1xf32>
    %103 = arith.divf %102, %99 : vector<16x1xf32>
    %cst_37 = arith.constant 1.000000e+00 : f32
    %104 = vector.broadcast %cst_37 : f32 to vector<16x1xf32>
    %105 = arith.select %101, %103, %104 : vector<16x1xi1>, vector<16x1xf32>
    %106 = arith.mulf %80, %105 : vector<16x1xf32>
    %107 = arith.mulf %85, %105 : vector<16x1xf32>
    %108 = vector.broadcast %106 : vector<16x1xf32> to vector<16x128xf32>
    %109 = arith.mulf %108, %5 : vector<16x128xf32>
    %110 = vector.broadcast %107 : vector<16x1xf32> to vector<16x128xf32>
    %111 = vector.broadcast %1 : vector<1x128xf32> to vector<16x128xf32>
    %112 = arith.mulf %110, %111 : vector<16x128xf32>
    %113 = arith.addf %109, %112 : vector<16x128xf32>
    %c0_38 = arith.constant 0 : index
    %c0_39 = arith.constant 0 : index
    %114 = vector.load %arg5[%c0_38, %c0_39] : memref<16x128xf32, #tpu.memory_space<vmem>>, vector<16x128xf32>
    tpu.vector_store %arg5[%c0_38, %c0_39], %113 {strides = array<i32>} : memref<16x128xf32, #tpu.memory_space<vmem>>, vector<16x128xf32>,
    return
  }
  func.func @transform_0(%arg0: i32) -> i32 {
    %c0_i32 = arith.constant 0 : i32
    %c0_i32_0 = arith.constant 0 : i32
    return %c0_i32 : i32
  }
  func.func @transform_1(%arg0: i32) -> (i32, i32) {
    %c0_i32 = arith.constant 0 : i32
    %c0_i32_0 = arith.constant 0 : i32
    return %arg0, %c0_i32 : i32, i32
  }
  func.func @transform_2(%arg0: i32) -> (i32, i32) {
    %c0_i32 = arith.constant 0 : i32
    %c0_i32_0 = arith.constant 0 : i32
    %c0_i32_1 = arith.constant 0 : i32
    return %c0_i32, %c0_i32_0 : i32, i32
  }
  func.func @transform_3(%arg0: i32) -> (i32, i32) {
    %c0_i32 = arith.constant 0 : i32
    %c0_i32_0 = arith.constant 0 : i32
    %c0_i32_1 = arith.constant 0 : i32
    return %c0_i32, %c0_i32_0 : i32, i32
  }
  func.func @transform_4(%arg0: i32) -> (i32, i32) {
    %c0_i32 = arith.constant 0 : i32
    %c0_i32_0 = arith.constant 0 : i32
    return %arg0, %c0_i32 : i32, i32
  }
}

module attributes {stable_mosaic.version = 11 : i64} {
  func.func @hyp_linear_kernel(%arg0: i32, %arg1: memref<1xf32, #tpu.memory_space<smem>>, %arg2: memref<16x128xf32, #tpu.memory_space<vmem>>, %arg3: memref<128x128xbf16, #tpu.memory_space<vmem>>, %arg4: memref<1x128xf32, #tpu.memory_space<vmem>>, %arg5: memref<16x128xf32, #tpu.memory_space<vmem>>) attributes {dimension_semantics = [#tpu.dimension_semantics<parallel>], iteration_bounds = array<i64: 1>, scalar_prefetch = 0 : i64, scratch_operands = 0 : i64, tpu.core_type = #tpu.core_type<tc>, window_params = [{transform_indices = @transform_0, window_bounds = array<i64: 1>}, {transform_indices = @transform_1, window_bounds = array<i64: 16, 128>}, {pipeline_mode = #tpu.pipeline_mode<synchronous>, transform_indices = @transform_2, window_bounds = array<i64: 128, 128>}, {pipeline_mode = #tpu.pipeline_mode<synchronous>, transform_indices = @transform_3, window_bounds = array<i64: 1, 128>}, {transform_indices = @transform_4, window_bounds = array<i64: 16, 128>}]} {
    %c0 = arith.constant 0 : index
    %c0_0 = arith.constant 0 : index
    %0 = vector.load %arg2[%c0, %c0_0] : memref<16x128xf32, #tpu.memory_space<vmem>>, vector<16x128xf32>
    %c0_1 = arith.constant 0 : index
    %c0_2 = arith.constant 0 : index
    %1 = vector.load %arg4[%c0_1, %c0_2] : memref<1x128xf32, #tpu.memory_space<vmem>>, vector<1x128xf32>
    %c0_3 = arith.constant 0 : index
    %2 = memref.load %arg1[%c0_3] : memref<1xf32, #tpu.memory_space<smem>>
    %3 = arith.truncf %0 : vector<16x128xf32> to vector<16x128xbf16>
    %c0_4 = arith.constant 0 : index
    %c0_5 = arith.constant 0 : index
    %4 = vector.load %arg3[%c0_4, %c0_5] : memref<128x128xbf16, #tpu.memory_space<vmem>>, vector<128x128xbf16>
    %cst = arith.constant dense<0.000000e+00> : vector<16x128xf32>
    %5 = tpu.matmul %3, %4, %cst {dimension_numbers = #tpu.dot_dimension_numbers<[1], [0], [0], [1], [0, 0, 1, 1], [], []>} : vector<16x128xbf16>, vector<128x128xbf16>, vector<16x128xf32> -> vector<16x128xf32>
    %6 = arith.mulf %0, %0 : vector<16x128xf32>
    %cst_6 = arith.constant dense<0.000000e+00> : vector<16xf32>
    %7 = vector.multi_reduction <add>, %6, %cst_6 [1] : vector<16x128xf32> to vector<16xf32>
    %8 = vector.shape_cast %7 : vector<16xf32> to vector<16x1xf32>
    %9 = arith.mulf %5, %5 : vector<16x128xf32>
    %cst_7 = arith.constant dense<0.000000e+00> : vector<16xf32>
    %10 = vector.multi_reduction <add>, %9, %cst_7 [1] : vector<16x128xf32> to vector<16xf32>
    %11 = vector.shape_cast %10 : vector<16xf32> to vector<16x1xf32>
    %12 = vector.broadcast %1 : vector<1x128xf32> to vector<16x128xf32>
    %13 = arith.mulf %5, %12 : vector<16x128xf32>
    %cst_8 = arith.constant dense<0.000000e+00> : vector<16xf32>
    %14 = vector.multi_reduction <add>, %13, %cst_8 [1] : vector<16x128xf32> to vector<16xf32>
    %15 = vector.shape_cast %14 : vector<16xf32> to vector<16x1xf32>
    %cst_9 = arith.constant 1.000000e-30 : f32
    %16 = vector.broadcast %cst_9 : f32 to vector<16x1xf32>
    %17 = arith.maximumf %8, %16 : vector<16x1xf32>
    %18 = math.sqrt %17 : vector<16x1xf32>
    %cst_10 = arith.constant 1.000000e-30 : f32
    %19 = vector.broadcast %cst_10 : f32 to vector<16x1xf32>
    %20 = arith.maximumf %11, %19 : vector<16x1xf32>
    %21 = math.sqrt %20 : vector<16x1xf32>
    %22 = arith.divf %21, %18 : vector<16x1xf32>
    %cst_11 = arith.constant 1.000000e+00 : f32
    %23 = vector.broadcast %cst_11 : f32 to vector<16x1xf32>
    %24 = arith.mulf %23, %18 : vector<16x1xf32>
    %cst_12 = arith.constant -0.99999988 : f32
    %cst_13 = arith.constant 0.99999988 : f32
    %25 = vector.broadcast %cst_12 : f32 to vector<16x1xf32>
    %26 = arith.maximumf %25, %24 : vector<16x1xf32>
    %27 = vector.broadcast %cst_13 : f32 to vector<16x1xf32>
    %28 = arith.minimumf %27, %26 : vector<16x1xf32>
    %29 = math.log1p %28 : vector<16x1xf32>
    %cst_14 = arith.constant 0.000000e+00 : f32
    %30 = vector.broadcast %cst_14 : f32 to vector<16x1xf32>
    %31 = arith.subf %30, %28 : vector<16x1xf32>
    %32 = math.log1p %31 : vector<16x1xf32>
    %33 = arith.subf %29, %32 : vector<16x1xf32>
    %cst_15 = arith.constant 5.000000e-01 : f32
    %34 = vector.broadcast %cst_15 : f32 to vector<16x1xf32>
    %35 = arith.mulf %34, %33 : vector<16x1xf32>
    %36 = arith.mulf %22, %35 : vector<16x1xf32>
    %37 = math.tanh %36 : vector<16x1xf32>
    %cst_16 = arith.constant 1.000000e+00 : f32
    %38 = vector.broadcast %cst_16 : f32 to vector<16x1xf32>
    %39 = arith.mulf %38, %21 : vector<16x1xf32>
    %40 = arith.divf %37, %39 : vector<16x1xf32>
    %cst_17 = arith.constant 0.000000e+00 : f32
    %41 = vector.broadcast %cst_17 : f32 to vector<16x1xf32>
    %42 = arith.cmpf oeq, %11, %41 : vector<16x1xf32>
    %cst_18 = arith.constant 0.000000e+00 : f32
    %43 = vector.broadcast %cst_18 : f32 to vector<16x1xf32>
    %44 = arith.select %42, %43, %40 : vector<16x1xi1>, vector<16x1xf32>
    %45 = math.absf %44 : vector<16x1xf32>
    %46 = arith.mulf %45, %21 : vector<16x1xf32>
    %cst_19 = arith.constant 0.999989986 : f32
    %47 = vector.broadcast %cst_19 : f32 to vector<16x1xf32>
    %48 = arith.cmpf ogt, %46, %47 : vector<16x1xf32>
    %cst_20 = arith.constant 1.000000e-15 : f32
    %49 = vector.broadcast %cst_20 : f32 to vector<16x1xf32>
    %50 = arith.maximumf %46, %49 : vector<16x1xf32>
    %cst_21 = arith.constant 0.999989986 : f32
    %51 = vector.broadcast %cst_21 : f32 to vector<16x1xf32>
    %52 = arith.divf %51, %50 : vector<16x1xf32>
    %cst_22 = arith.constant 1.000000e+00 : f32
    %53 = vector.broadcast %cst_22 : f32 to vector<16x1xf32>
    %54 = arith.select %48, %52, %53 : vector<16x1xi1>, vector<16x1xf32>
    %55 = arith.mulf %44, %54 : vector<16x1xf32>
    %56 = arith.mulf %46, %54 : vector<16x1xf32>
    %57 = arith.mulf %56, %56 : vector<16x1xf32>
    %58 = arith.mulf %55, %15 : vector<16x1xf32>
    %cst_23 = arith.constant 2.000000e+00 : f32
    %59 = vector.broadcast %cst_23 : f32 to vector<16x1xf32>
    %60 = arith.mulf %59, %58 : vector<16x1xf32>
    %cst_24 = arith.constant 1.000000e+00 : f32
    %61 = vector.broadcast %cst_24 : f32 to vector<16x1xf32>
    %62 = arith.addf %61, %60 : vector<16x1xf32>
    %cst_25 = arith.constant 1.000000e+00 : f32
    %63 = vector.broadcast %cst_25 : f32 to vector<16x1xf32>
    %64 = arith.mulf %63, %57 : vector<16x1xf32>
    %65 = vector.broadcast %2 : f32 to vector<16x1xf32>
    %66 = arith.mulf %64, %65 : vector<16x1xf32>
    %67 = arith.addf %62, %66 : vector<16x1xf32>
    %cst_26 = arith.constant 1.000000e-15 : f32
    %68 = vector.broadcast %cst_26 : f32 to vector<16x1xf32>
    %69 = arith.maximumf %67, %68 : vector<16x1xf32>
    %cst_27 = arith.constant 1.000000e+00 : f32
    %70 = vector.broadcast %cst_27 : f32 to vector<16x1xf32>
    %71 = arith.divf %70, %69 : vector<16x1xf32>
    %cst_28 = arith.constant 2.000000e+00 : f32
    %72 = vector.broadcast %cst_28 : f32 to vector<16x1xf32>
    %73 = arith.mulf %72, %58 : vector<16x1xf32>
    %cst_29 = arith.constant 1.000000e+00 : f32
    %74 = vector.broadcast %cst_29 : f32 to vector<16x1xf32>
    %75 = arith.addf %74, %73 : vector<16x1xf32>
    %cst_30 = arith.constant 1.000000e+00 : f32
    %76 = arith.mulf %cst_30, %2 : f32
    %77 = vector.broadcast %76 : f32 to vector<16x1xf32>
    %78 = arith.addf %75, %77 : vector<16x1xf32>
    %79 = arith.mulf %78, %55 : vector<16x1xf32>
    %80 = arith.mulf %79, %71 : vector<16x1xf32>
    %cst_31 = arith.constant 1.000000e+00 : f32
    %81 = vector.broadcast %cst_31 : f32 to vector<16x1xf32>
    %82 = arith.mulf %81, %57 : vector<16x1xf32>
    %cst_32 = arith.constant 1.000000e+00 : f32
    %83 = vector.broadcast %cst_32 : f32 to vector<16x1xf32>
    %84 = arith.subf %83, %82 : vector<16x1xf32>
    %85 = arith.mulf %84, %71 : vector<16x1xf32>
    %86 = arith.mulf %80, %80 : vector<16x1xf32>
    %87 = arith.mulf %86, %11 : vector<16x1xf32>
    %88 = arith.mulf %80, %85 : vector<16x1xf32>
    %cst_33 = arith.constant 2.000000e+00 : f32
    %89 = vector.broadcast %cst_33 : f32 to vector<16x1xf32>
    %90 = arith.mulf %89, %88 : vector<16x1xf32>
    %91 = arith.mulf %90, %15 : vector<16x1xf32>
    %92 = arith.addf %87, %91 : vector<16x1xf32>
    %93 = arith.mulf %85, %85 : vector<16x1xf32>
    %94 = vector.broadcast %2 : f32 to vector<16x1xf32>
    %95 = arith.mulf %93, %94 : vector<16x1xf32>
    %96 = arith.addf %92, %95 : vector<16x1xf32>
    %cst_34 = arith.constant 1.000000e-30 : f32
    %97 = vector.broadcast %cst_34 : f32 to vector<16x1xf32>
    %98 = arith.maximumf %96, %97 : vector<16x1xf32>
    %99 = math.sqrt %98 : vector<16x1xf32>
    %cst_35 = arith.constant 0.999989986 : f32
    %100 = vector.broadcast %cst_35 : f32 to vector<16x1xf32>
    %101 = arith.cmpf ogt, %99, %100 : vector<16x1xf32>
    %cst_36 = arith.constant 0.999989986 : f32
    %102 = vector.broadcast %cst_36 : f32 to vector<16x1xf32>
    %103 = arith.divf %102, %99 : vector<16x1xf32>
    %cst_37 = arith.constant 1.000000e+00 : f32
    %104 = vector.broadcast %cst_37 : f32 to vector<16x1xf32>
    %105 = arith.select %101, %103, %104 : vector<16x1xi1>, vector<16x1xf32>
    %106 = arith.mulf %80, %105 : vector<16x1xf32>
    %107 = arith.mulf %85, %105 : vector<16x1xf32>
    %108 = vector.broadcast %106 : vector<16x1xf32> to vector<16x128xf32>
    %109 = arith.mulf %108, %5 : vector<16x128xf32>
    %110 = vector.broadcast %107 : vector<16x1xf32> to vector<16x128xf32>
    %111 = vector.broadcast %1 : vector<1x128xf32> to vector<16x128xf32>
    %112 = arith.mulf %110, %111 : vector<16x128xf32>
    %113 = arith.addf %109, %112 : vector<16x128xf32>
    %c0_38 = arith.constant 0 : index
    %c0_39 = arith.constant 0 : index
    %114 = vector.load %arg5[%c0_38, %c0_39] : memref<16x128xf32, #tpu.memory_space<vmem>>, vector<16x128xf32>
    tpu.vector_store %arg5[%c0_38, %c0_39], %113 {strides = array<i32>} : memref<16x128xf32, #tpu.memory_space<vmem>>, vector<16x128xf32>,
    return
  }
  func.func @transform_0(%arg0: i32) -> i32 {
    %c0_i32 = arith.constant 0 : i32
    %c0_i32_0 = arith.constant 0 : i32
    return %c0_i32 : i32
  }
  func.func @transform_1(%arg0: i32) -> (i32, i32) {
    %c0_i32 = arith.constant 0 : i32
    %c0_i32_0 = arith.constant 0 : i32
    return %arg0, %c0_i32 : i32, i32
  }
  func.func @transform_2(%arg0: i32) -> (i32, i32) {
    %c0_i32 = arith.constant 0 : i32
    %c0_i32_0 = arith.constant 0 : i32
    %c0_i32_1 = arith.constant 0 : i32
    return %c0_i32, %c0_i32_0 : i32, i32
  }
  func.func @transform_3(%arg0: i32) -> (i32, i32) {
    %c0_i32 = arith.constant 0 : i32
    %c0_i32_0 = arith.constant 0 : i32
    %c0_i32_1 = arith.constant 0 : i32
    return %c0_i32, %c0_i32_0 : i32, i32
  }
  func.func @transform_4(%arg0: i32) -> (i32, i32) {
    %c0_i32 = arith.constant 0 : i32
    %c0_i32_0 = arith.constant 0 : i32
    return %arg0, %c0_i32 : i32, i32
  }
}

</mosaic_0001>

<llo_original>
// kernel: tpu_custom_call.1
$region0: #{tpu_custom_call.1}
  #allocation0 [shape = 'u32[]', space=smem, size = 0x4, offset = 0x4, fixed_abs, tag = 'smem constant byte address 0x4 - core index']
  #allocation1 [shape = 'u32[144,128]{1,0:T(1,128)}', space=vmem, size = 0x12000, scoped, tag = 'internal scratch']
  #allocation2 [shape = 'f32[1]{0:T(128)S(6)}', space=smem, size = 0x200, scoped, tag = 'scoped memory for tpu_custom_call.1']
  %s0 = inlined_call_operand.<no memory space> [shape: f32[1], index: 0, kind: input, shape index: {}]
  %s1 = inlined_call_operand.hbm [shape: f32[16,128], index: 1, kind: input, shape index: {}]
  %s2 = inlined_call_operand.hbm [shape: bf16[128,128], index: 2, kind: input, shape index: {}]
  %s3 = inlined_call_operand.vmem [shape: f32[1,128], index: 3, kind: input, shape index: {}]
  %s4 = inlined_call_operand.hbm [shape: f32[16,128], index: 4, kind: output, shape index: {}]
  %s5 = sld [smem:[#allocation0]]
  $region34: #{tpu_custom_call.1} parent=0
    _
  %s7 = ssub.s32 1, %s5
  %s8 = scalar_select 0, %s7, %s5
  %9 = sst [smem:[#allocation2]] %s0
  $region1: #{tpu_custom_call.1} parent=0
    #allocation3 [shape = 'u8[8192]{0}', space=vmem, size = 0x2000, scoped, tag = 'input window, operand 1, single buffered']
    #allocation4 [shape = 's32[1]{0}', space=sflag, size = 0x4, scoped, tag = 'scoped memory for tpu_custom_call.1']
    #allocation5 [shape = 's32[1]{0}', space=sflag, size = 0x4, scoped, tag = 'scoped memory for tpu_custom_call.1']
    #allocation6 [shape = 'u8[32768]{0}', space=vmem, size = 0x8000, scoped, tag = 'input window, operand 2, single buffered']
    #allocation7 [shape = 's32[1]{0}', space=sflag, size = 0x4, scoped, tag = 'scoped memory for tpu_custom_call.1']
    #allocation8 [shape = 'u8[8192]{0}', space=vmem, size = 0x2000, scoped, tag = 'output window, operand 0, single buffered']
    %10 = vsyncpa [#allocation4], 0
    %11 = vsyncpa [#allocation7], 0
    %12 = vsyncpa [#allocation5], 0
    // Predicated region
    $region2: #{tpu_custom_call.1} parent=1 // pred_check
      _
    $region3: #{tpu_custom_call.1} parent=1 // pred_check_branch
      %14 = sbr.rel (0) target = $region5
    $region4: #{tpu_custom_call.1} parent=1 // pred_region
      _
    $region5: #{tpu_custom_call.1} parent=1 // pred_fallthru
      _
    // Predicated region
    $region6: #{tpu_custom_call.1} parent=1 // pred_check
      _
    $region7: #{tpu_custom_call.1} parent=1 // pred_check_branch
      %16 = sbr.rel (0) target = $region9
    $region8: #{tpu_custom_call.1} parent=1 // pred_region
      %s18 = ssub.s32 256, 256
      %19 = vsyncadd [#allocation4], %s18
      %s20 = sshll.u32 [#allocation3], 4
      %s21 = int_to_ptr.vmem [resolvable:$true] %s20
      %26 = dma.hbm_to_vmem [thread:$0]  %s1, 256, %s21, [#allocation4], 128, 128, 8
    $region9: #{tpu_custom_call.1} parent=1 // pred_fallthru
      _
    // Predicated region
    $region10: #{tpu_custom_call.1} parent=1 // pred_check
      _
    $region11: #{tpu_custom_call.1} parent=1 // pred_check_branch
      %28 = sbr.rel (0) target = $region13
    $region12: #{tpu_custom_call.1} parent=1 // pred_region
      %s30 = ssub.s32 1024, 1024
      %31 = vsyncadd [#allocation7], %s30
      %s32 = sshll.u32 [#allocation6], 4
      %s33 = int_to_ptr.vmem [resolvable:$true] %s32
      %38 = dma.hbm_to_vmem [thread:$0]  %s2, 1024, %s33, [#allocation7], 64, 64, 4
    $region13: #{tpu_custom_call.1} parent=1 // pred_fallthru
      _
    // Predicated region
    $region14: #{tpu_custom_call.1} parent=1 // pred_check
      _
    $region15: #{tpu_custom_call.1} parent=1 // pred_check_branch
      %40 = sbr.rel (0) target = $region17
    $region16: #{tpu_custom_call.1} parent=1 // pred_region
      _
    $region17: #{tpu_custom_call.1} parent=1 // pred_fallthru
      _
    // Predicated region
    $region18: #{tpu_custom_call.1} parent=1 // pred_check
      _
    $region19: #{tpu_custom_call.1} parent=1 // pred_check_branch
      %42 = sbr.rel (0) target = $region21
    $region20: #{tpu_custom_call.1} parent=1 // pred_region
      %43 = dma.done [#allocation4], 256
    $region21: #{tpu_custom_call.1} parent=1 // pred_fallthru
      _
    // Predicated region
    $region22: #{tpu_custom_call.1} parent=1 // pred_check
      _
    $region23: #{tpu_custom_call.1} parent=1 // pred_check_branch
      %45 = sbr.rel (0) target = $region25
    $region24: #{tpu_custom_call.1} parent=1 // pred_region
      %46 = dma.done [#allocation7], 1024
    $region25: #{tpu_custom_call.1} parent=1 // pred_fallthru
      _
    %v48 = vld [vmem:[#allocation3] sm:$0xff]
    %v49 = vld [vmem:[#allocation3 + $0x8] sm:$0xff]
    %v50 = vld [vmem:[%s3] sm:$0x1]
    %s51 = sld [smem:[#allocation2]]
    %v52 = vpack.c.bf16 %v49, %v48
    %v53 = vld [vmem:[#allocation6] sm:$0xf]
    %v54 = vld [vmem:[#allocation6 + $0x4] sm:$0xf]
    %v55 = vld [vmem:[#allocation6 + $0x8] sm:$0xf]
    %v56 = vld [vmem:[#allocation6 + $0xc] sm:$0xf]
    %v57 = vld [vmem:[#allocation6 + $0x10] sm:$0xf]
    %v58 = vld [vmem:[#allocation6 + $0x14] sm:$0xf]
    %v59 = vld [vmem:[#allocation6 + $0x18] sm:$0xf]
    %v60 = vld [vmem:[#allocation6 + $0x1c] sm:$0xf]
    %v61 = vld [vmem:[#allocation6 + $0x20] sm:$0xf]
    %v62 = vld [vmem:[#allocation6 + $0x24] sm:$0xf]
    %v63 = vld [vmem:[#allocation6 + $0x28] sm:$0xf]
    %v64 = vld [vmem:[#allocation6 + $0x2c] sm:$0xf]
    %v65 = vld [vmem:[#allocation6 + $0x30] sm:$0xf]
    %v66 = vld [vmem:[#allocation6 + $0x34] sm:$0xf]
    %v67 = vld [vmem:[#allocation6 + $0x38] sm:$0xf]
    %v68 = vld [vmem:[#allocation6 + $0x3c] sm:$0xf]
    %v85 = vunpack.c.l.b16 %v53
    %v86 = vunpack.c.l.b16 %v54
    %v87 = vunpack.c.l.b16 %v55
    %v88 = vunpack.c.l.b16 %v56
    %v89 = vunpack.c.l.b16 %v57
    %v90 = vunpack.c.l.b16 %v58
    %v91 = vunpack.c.l.b16 %v59
    %v92 = vunpack.c.l.b16 %v60
    %v93 = vunpack.c.l.b16 %v61
    %v94 = vunpack.c.l.b16 %v62
    %v95 = vunpack.c.l.b16 %v63
    %v96 = vunpack.c.l.b16 %v64
    %v97 = vunpack.c.l.b16 %v65
    %v98 = vunpack.c.l.b16 %v66
    %v99 = vunpack.c.l.b16 %v67
    %v100 = vunpack.c.l.b16 %v68
    %v101 = vpack.c.b16 %v86, %v85
    %v102 = vpack.c.b16 %v88, %v87
    %v103 = vpack.c.b16 %v90, %v89
    %v104 = vpack.c.b16 %v92, %v91
    %v105 = vpack.c.b16 %v94, %v93
    %v106 = vpack.c.b16 %v96, %v95
    %v107 = vpack.c.b16 %v98, %v97
    %v108 = vpack.c.b16 %v100, %v99
    %117 = vmatprep.subr.bf16.mxu0 0
    %118 = vmatpush1.bf16.msra.mxu0 %v108
    %119 = vmatprep.subr.bf16.mxu0 0
    %120 = vmatpush1.bf16.msra.mxu0 %v107
    %121 = vmatprep.subr.bf16.mxu0 0
    %122 = vmatpush1.bf16.msra.mxu0 %v106
    %123 = vmatprep.subr.bf16.mxu0 0
    %124 = vmatpush1.bf16.msra.mxu0 %v105
    %125 = vmatprep.subr.bf16.mxu0 0
    %126 = vmatpush1.bf16.msra.mxu0 %v104
    %127 = vmatprep.subr.bf16.mxu0 0
    %128 = vmatpush1.bf16.msra.mxu0 %v103
    %129 = vmatprep.subr.bf16.mxu0 0
    %130 = vmatpush1.bf16.msra.mxu0 %v102
    %131 = vmatprep.subr.bf16.mxu0 0
    %132 = vmatpush1.bf16.msra.mxu0 %v101
    %133 = vmatprep.subr.bf16.mxu0 0
    %134 = vmatpush2.bf16.msra.mxu0 0
    %135 = vmatprep.subr.bf16.mxu0 0
    %136 = vmatpush2.bf16.msra.mxu0 0
    %137 = vmatprep.subr.bf16.mxu0 0
    %138 = vmatpush2.bf16.msra.mxu0 0
    %139 = vmatprep.subr.bf16.mxu0 0
    %140 = vmatpush2.bf16.msra.mxu0 0
    %141 = vmatprep.subr.bf16.mxu0 0
    %142 = vmatpush2.bf16.msra.mxu0 0
    %143 = vmatprep.subr.bf16.mxu0 0
    %144 = vmatpush2.bf16.msra.mxu0 0
    %145 = vmatprep.subr.bf16.mxu0 0
    %146 = vmatpush2.bf16.msra.mxu0 0
    %147 = vmatprep.subr.bf16.mxu0 0
    %148 = vmatpush2.bf16.msra.mxu0 0
    %149 = vmatprep.mubr.bf16.mxu0 0
    %150 = vmatmul.mubr.bf16.gmra.mxu0 %v52
    %v151 = vpop.f32.mrf.mxu0
    %v152 = vadd.f32 0.0, %v151
    %v153 = vpop.f32.mrf.mxu0
    %v154 = vpop.f32.mrf.mxu0
    %v155 = vadd.f32 0.0, %v154
    %v156 = vpop.f32.mrf.mxu0
    %157 = vdwg.mxu0
    %v158 = vmul.f32 %v48, %v48
    %v159 = vmul.f32 %v49, %v49
    %160 = vadd.xlane.f32.xlu0 %v158
    %v161 = vpop.xlane.xlu0 %160
    %162 = vadd.xlane.f32.xlu0 %v159
    %v163 = vpop.xlane.xlu0 %162
    %v164 = vmul.f32 %v152, %v152
    %v165 = vmul.f32 %v155, %v155
    %166 = vadd.xlane.f32.xlu0 %v164
    %v167 = vpop.xlane.xlu0 %166
    %168 = vadd.xlane.f32.xlu0 %v165
    %v169 = vpop.xlane.xlu0 %168
    %v171 = vlaneseq
    %v172 = vshrl.u32 %v171, 7
    %v173 = vsub.s32 0, %v172
    %v174 = vrot.slane %v50, %v173
    %v176 = vmul.f32 %v152, %v174
    %v177 = vmul.f32 %v155, %v174
    %178 = vadd.xlane.f32.xlu0 %v176
    %v179 = vpop.xlane.xlu0 %178
    %180 = vadd.xlane.f32.xlu0 %v177
    %v181 = vpop.xlane.xlu0 %180
    %v182 = vmax.f32 %v161, 1e-30
    %v183 = vmax.f32 %v163, 1e-30
    %v184 = vrsqrt.pop %v182
    %v185 = vmul.f32 %v182, %v184
    %vm186 = vcmp.eq.f32.partialorder %v182, inf
    %v187 = vsel %vm186, %v182, %v185
    %vm188 = vcmp.eq.f32.partialorder %v182, 0.0
    %v189 = vand.u32 %v182, 2147483648
    %v190 = vsel %vm188, %v189, %v187
    %v191 = vrsqrt.pop %v183
    %v192 = vmul.f32 %v183, %v191
    %vm193 = vcmp.eq.f32.partialorder %v183, inf
    %v194 = vsel %vm193, %v183, %v192
    %vm195 = vcmp.eq.f32.partialorder %v183, 0.0
    %v196 = vand.u32 %v183, 2147483648
    %v197 = vsel %vm195, %v196, %v194
    %v198 = vmax.f32 %v167, 1e-30
    %v199 = vmax.f32 %v169, 1e-30
    %v200 = vrsqrt.pop %v198
    %v201 = vmul.f32 %v198, %v200
    %vm202 = vcmp.eq.f32.partialorder %v198, inf
    %v203 = vsel %vm202, %v198, %v201
    %vm204 = vcmp.eq.f32.partialorder %v198, 0.0
    %v205 = vand.u32 %v198, 2147483648
    %v206 = vsel %vm204, %v205, %v203
    %v207 = vrsqrt.pop %v199
    %v208 = vmul.f32 %v199, %v207
    %vm209 = vcmp.eq.f32.partialorder %v199, inf
    %v210 = vsel %vm209, %v199, %v208
    %vm211 = vcmp.eq.f32.partialorder %v199, 0.0
    %v212 = vand.u32 %v199, 2147483648
    %v213 = vsel %vm211, %v212, %v210
    %v214 = vrcp.pop %v190
    %v215 = vmul.f32 %v206, %v214
    %v216 = vrcp.pop %v197
    %v217 = vmul.f32 %v213, %v216
    %v218 = vmax.f32 %v190, -0.9999999
    %v219 = vmax.f32 %v197, -0.9999999
    %v220 = vmin.f32 %v218, 0.9999999
    %v221 = vmin.f32 %v219, 0.9999999
    %v222 = vadd.f32 %v220, 1.0
    %v223 = vlog2.pop %v222
    %v224 = vmul.f32 %v223, 0.6931472
    %v225 = vmul.f32 -0.5, %v220
    %v226 = vadd.f32 %v225, 1.0
    %v227 = vmul.f32 %v226, %v220
    %v228 = vand.u32 2147483647, %v220
    %vm229 = vcmp.lt.f32.partialorder %v228, 0.0004427343
    %v230 = vsel %vm229, %v227, %v224
    %v231 = vadd.f32 %v221, 1.0
    %v232 = vlog2.pop %v231
    %v233 = vmul.f32 %v232, 0.6931472
    %v234 = vmul.f32 -0.5, %v221
    %v235 = vadd.f32 %v234, 1.0
    %v236 = vmul.f32 %v235, %v221
    %v237 = vand.u32 2147483647, %v221
    %vm238 = vcmp.lt.f32.partialorder %v237, 0.0004427343
    %v239 = vsel %vm238, %v236, %v233
    %v240 = vsub.f32 0.0, %v220
    %v241 = vsub.f32 0.0, %v221
    %v242 = vadd.f32 %v240, 1.0
    %v243 = vlog2.pop %v242
    %v244 = vmul.f32 %v243, 0.6931472
    %v245 = vmul.f32 -0.5, %v240
    %v246 = vadd.f32 %v245, 1.0
    %v247 = vmul.f32 %v246, %v240
    %v248 = vand.u32 2147483647, %v240
    %vm249 = vcmp.lt.f32.partialorder %v248, 0.0004427343
    %v250 = vsel %vm249, %v247, %v244
    %v251 = vadd.f32 %v241, 1.0
    %v252 = vlog2.pop %v251
    %v253 = vmul.f32 %v252, 0.6931472
    %v254 = vmul.f32 -0.5, %v241
    %v255 = vadd.f32 %v254, 1.0
    %v256 = vmul.f32 %v255, %v241
    %v257 = vand.u32 2147483647, %v241
    %vm258 = vcmp.lt.f32.partialorder %v257, 0.0004427343
    %v259 = vsel %vm258, %v256, %v253
    %v260 = vsub.f32 %v230, %v250
    %v261 = vsub.f32 %v239, %v259
    %v262 = vmul.f32 %v260, 0.5
    %v263 = vmul.f32 %v261, 0.5
    %v264 = vmul.f32 %v215, %v262
    %v265 = vmul.f32 %v217, %v263
    %v266 = vtanh.pop %v264
    %v267 = vtanh.pop %v265
    %v268 = vrcp.pop %v206
    %v269 = vmul.f32 %v266, %v268
    %v270 = vrcp.pop %v213
    %v271 = vmul.f32 %v267, %v270
    %vm272 = vcmp.eq.f32.partialorder %v167, 0.0
    %vm273 = vcmp.eq.f32.partialorder %v169, 0.0
    %v274 = vsel %vm272, 0.0, %v269
    %v275 = vsel %vm273, 0.0, %v271
    %v276 = vand.u32 2147483647, %v274
    %v277 = vand.u32 2147483647, %v275
    %v278 = vmul.f32 %v276, %v206
    %v279 = vmul.f32 %v277, %v213
    %vm280 = vcmp.gt.f32.partialorder %v278, 0.99999
    %vm281 = vcmp.gt.f32.partialorder %v279, 0.99999
    %v282 = vmax.f32 %v278, 1e-15
    %v283 = vmax.f32 %v279, 1e-15
    %v284 = vrcp.pop %v282
    %v285 = vmul.f32 0.99999, %v284
    %v286 = vrcp.pop %v283
    %v287 = vmul.f32 0.99999, %v286
    %v288 = vsel %vm280, %v285, 1.0
    %v289 = vsel %vm281, %v287, 1.0
    %v290 = vmul.f32 %v274, %v288
    %v291 = vmul.f32 %v275, %v289
    %v292 = vmul.f32 %v278, %v288
    %v293 = vmul.f32 %v279, %v289
    %v294 = vmul.f32 %v292, %v292
    %v295 = vmul.f32 %v293, %v293
    %v296 = vmul.f32 %v290, %v179
    %v297 = vmul.f32 %v291, %v181
    %v298 = vmul.f32 %v296, 2.0
    %v299 = vmul.f32 %v297, 2.0
    %v300 = vadd.f32 %v298, 1.0
    %v301 = vadd.f32 %v299, 1.0
    %v302 = vstv %s51
    %v303 = vmul.f32 %v294, %v302
    %v304 = vmul.f32 %v295, %v302
    %v305 = vadd.f32 %v300, %v303
    %v306 = vadd.f32 %v301, %v304
    %v307 = vmax.f32 %v305, 1e-15
    %v308 = vmax.f32 %v306, 1e-15
    %v309 = vrcp.pop %v307
    %v310 = vmul.f32 1.0, %v309
    %v311 = vrcp.pop %v308
    %v312 = vmul.f32 1.0, %v311
    %v313 = vadd.f32 %v300, %v302
    %v314 = vadd.f32 %v301, %v302
    %v315 = vmul.f32 %v313, %v290
    %v316 = vmul.f32 %v314, %v291
    %v317 = vmul.f32 %v315, %v310
    %v318 = vmul.f32 %v316, %v312
    %v319 = vsub.f32 1.0, %v294
    %v320 = vsub.f32 1.0, %v295
    %v321 = vmul.f32 %v319, %v310
    %v322 = vmul.f32 %v320, %v312
    %v323 = vmul.f32 %v317, %v317
    %v324 = vmul.f32 %v318, %v318
    %v325 = vmul.f32 %v323, %v167
    %v326 = vmul.f32 %v324, %v169
    %v327 = vmul.f32 %v317, %v321
    %v328 = vmul.f32 %v318, %v322
    %v329 = vmul.f32 %v327, 2.0
    %v330 = vmul.f32 %v328, 2.0
    %v331 = vmul.f32 %v329, %v179
    %v332 = vmul.f32 %v330, %v181
    %v333 = vadd.f32 %v325, %v331
    %v334 = vadd.f32 %v326, %v332
    %v335 = vmul.f32 %v321, %v321
    %v336 = vmul.f32 %v322, %v322
    %v337 = vmul.f32 %v335, %v302
    %v338 = vmul.f32 %v336, %v302
    %v339 = vadd.f32 %v333, %v337
    %v340 = vadd.f32 %v334, %v338
    %v341 = vmax.f32 %v339, 1e-30
    %v342 = vmax.f32 %v340, 1e-30
    %v343 = vrsqrt.pop %v341
    %v344 = vmul.f32 %v341, %v343
    %vm345 = vcmp.eq.f32.partialorder %v341, inf
    %v346 = vsel %vm345, %v341, %v344
    %vm347 = vcmp.eq.f32.partialorder %v341, 0.0
    %v348 = vand.u32 %v341, 2147483648
    %v349 = vsel %vm347, %v348, %v346
    %v350 = vrsqrt.pop %v342
    %v351 = vmul.f32 %v342, %v350
    %vm352 = vcmp.eq.f32.partialorder %v342, inf
    %v353 = vsel %vm352, %v342, %v351
    %vm354 = vcmp.eq.f32.partialorder %v342, 0.0
    %v355 = vand.u32 %v342, 2147483648
    %v356 = vsel %vm354, %v355, %v353
    %vm357 = vcmp.gt.f32.partialorder %v349, 0.99999
    %vm358 = vcmp.gt.f32.partialorder %v356, 0.99999
    %v359 = vrcp.pop %v349
    %v360 = vmul.f32 0.99999, %v359
    %v361 = vrcp.pop %v356
    %v362 = vmul.f32 0.99999, %v361
    %v363 = vsel %vm357, %v360, 1.0
    %v364 = vsel %vm358, %v362, 1.0
    %v365 = vmul.f32 %v317, %v363
    %v366 = vmul.f32 %v318, %v364
    %v367 = vmul.f32 %v321, %v363
    %v368 = vmul.f32 %v322, %v364
    %v369 = vmul.f32 %v365, %v152
    %v370 = vmul.f32 %v366, %v155
    %v371 = vmul.f32 %v367, %v174
    %v372 = vmul.f32 %v368, %v174
    %v373 = vadd.f32 %v369, %v371
    %v374 = vadd.f32 %v370, %v372
    %375 = vst [vmem:[#allocation8] sm:$0xff] %v373
    %376 = vst [vmem:[#allocation8 + $0x8] sm:$0xff] %v374
    // Predicated region
    $region26: #{tpu_custom_call.1} parent=1 // pred_check
      _
    $region27: #{tpu_custom_call.1} parent=1 // pred_check_branch
      %378 = sbr.rel (0) target = $region29
    $region28: #{tpu_custom_call.1} parent=1 // pred_region
      %s380 = ssub.s32 256, 256
      %381 = vsyncadd [#allocation5], %s380
      %s382 = sshll.u32 [#allocation8], 4
      %s383 = int_to_ptr.vmem [resolvable:$true] %s382
      %388 = dma.vmem_to_hbm [thread:$0]  %s383, 256, %s4, [#allocation5], 128, 128, 8
    $region29: #{tpu_custom_call.1} parent=1 // pred_fallthru
      _
    // Predicated region
    $region30: #{tpu_custom_call.1} parent=1 // pred_check
      _
    $region31: #{tpu_custom_call.1} parent=1 // pred_check_branch
      %390 = sbr.rel (0) target = $region33
    $region32: #{tpu_custom_call.1} parent=1 // pred_region
      %391 = dma.done [#allocation5], 256
    $region33: #{tpu_custom_call.1} parent=1 // pred_fallthru
      _
    %392 = vsyncpa [#allocation4], 1
    %393 = vsyncpa [#allocation7], 1
    %394 = vsyncpa [#allocation5], 1

// kernel: tpu_custom_call.1
$region0: #{tpu_custom_call.1}
  #allocation0 [shape = 'u32[]', space=smem, size = 0x4, offset = 0x4, fixed_abs, tag = 'smem constant byte address 0x4 - core index']
  #allocation1 [shape = 'u32[144,128]{1,0:T(1,128)}', space=vmem, size = 0x12000, scoped, tag = 'internal scratch']
  #allocation2 [shape = 'f32[1]{0:T(128)S(6)}', space=smem, size = 0x200, scoped, tag = 'scoped memory for tpu_custom_call.1']
  %s0 = inlined_call_operand.<no memory space> [shape: f32[1], index: 0, kind: input, shape index: {}]
  %s1 = inlined_call_operand.hbm [shape: f32[16,128], index: 1, kind: input, shape index: {}]
  %s2 = inlined_call_operand.hbm [shape: bf16[128,128], index: 2, kind: input, shape index: {}]
  %s3 = inlined_call_operand.vmem [shape: f32[1,128], index: 3, kind: input, shape index: {}]
  %s4 = inlined_call_operand.hbm [shape: f32[16,128], index: 4, kind: output, shape index: {}]
  %s5 = sld [smem:[#allocation0]]
  $region34: #{tpu_custom_call.1} parent=0
    _
  %s7 = ssub.s32 1, %s5
  %s8 = scalar_select 0, %s7, %s5
  %9 = sst [smem:[#allocation2]] %s0
  $region1: #{tpu_custom_call.1} parent=0
    #allocation3 [shape = 'u8[8192]{0}', space=vmem, size = 0x2000, scoped, tag = 'input window, operand 1, single buffered']
    #allocation4 [shape = 's32[1]{0}', space=sflag, size = 0x4, scoped, tag = 'scoped memory for tpu_custom_call.1']
    #allocation5 [shape = 's32[1]{0}', space=sflag, size = 0x4, scoped, tag = 'scoped memory for tpu_custom_call.1']
    #allocation6 [shape = 'u8[32768]{0}', space=vmem, size = 0x8000, scoped, tag = 'input window, operand 2, single buffered']
    #allocation7 [shape = 's32[1]{0}', space=sflag, size = 0x4, scoped, tag = 'scoped memory for tpu_custom_call.1']
    #allocation8 [shape = 'u8[8192]{0}', space=vmem, size = 0x2000, scoped, tag = 'output window, operand 0, single buffered']
    %10 = vsyncpa [#allocation4], 0
    %11 = vsyncpa [#allocation7], 0
    %12 = vsyncpa [#allocation5], 0
    // Predicated region
    $region2: #{tpu_custom_call.1} parent=1 // pred_check
      _
    $region3: #{tpu_custom_call.1} parent=1 // pred_check_branch
      %14 = sbr.rel (0) target = $region5
    $region4: #{tpu_custom_call.1} parent=1 // pred_region
      _
    $region5: #{tpu_custom_call.1} parent=1 // pred_fallthru
      _
    // Predicated region
    $region6: #{tpu_custom_call.1} parent=1 // pred_check
      _
    $region7: #{tpu_custom_call.1} parent=1 // pred_check_branch
      %16 = sbr.rel (0) target = $region9
    $region8: #{tpu_custom_call.1} parent=1 // pred_region
      %s18 = ssub.s32 256, 256
      %19 = vsyncadd [#allocation4], %s18
      %s20 = sshll.u32 [#allocation3], 4
      %s21 = int_to_ptr.vmem [resolvable:$true] %s20
      %26 = dma.hbm_to_vmem [thread:$0]  %s1, 256, %s21, [#allocation4], 128, 128, 8
    $region9: #{tpu_custom_call.1} parent=1 // pred_fallthru
      _
    // Predicated region
    $region10: #{tpu_custom_call.1} parent=1 // pred_check
      _
    $region11: #{tpu_custom_call.1} parent=1 // pred_check_branch
      %28 = sbr.rel (0) target = $region13
    $region12: #{tpu_custom_call.1} parent=1 // pred_region
      %s30 = ssub.s32 1024, 1024
      %31 = vsyncadd [#allocation7], %s30
      %s32 = sshll.u32 [#allocation6], 4
      %s33 = int_to_ptr.vmem [resolvable:$true] %s32
      %38 = dma.hbm_to_vmem [thread:$0]  %s2, 1024, %s33, [#allocation7], 64, 64, 4
    $region13: #{tpu_custom_call.1} parent=1 // pred_fallthru
      _
    // Predicated region
    $region14: #{tpu_custom_call.1} parent=1 // pred_check
      _
    $region15: #{tpu_custom_call.1} parent=1 // pred_check_branch
      %40 = sbr.rel (0) target = $region17
    $region16: #{tpu_custom_call.1} parent=1 // pred_region
      _
    $region17: #{tpu_custom_call.1} parent=1 // pred_fallthru
      _
    // Predicated region
    $region18: #{tpu_custom_call.1} parent=1 // pred_check
      _
    $region19: #{tpu_custom_call.1} parent=1 // pred_check_branch
      %42 = sbr.rel (0) target = $region21
    $region20: #{tpu_custom_call.1} parent=1 // pred_region
      %43 = dma.done [#allocation4], 256
    $region21: #{tpu_custom_call.1} parent=1 // pred_fallthru
      _
    // Predicated region
    $region22: #{tpu_custom_call.1} parent=1 // pred_check
      _
    $region23: #{tpu_custom_call.1} parent=1 // pred_check_branch
      %45 = sbr.rel (0) target = $region25
    $region24: #{tpu_custom_call.1} parent=1 // pred_region
      %46 = dma.done [#allocation7], 1024
    $region25: #{tpu_custom_call.1} parent=1 // pred_fallthru
      _
    %v48 = vld [vmem:[#allocation3] sm:$0xff]
    %v49 = vld [vmem:[#allocation3 + $0x8] sm:$0xff]
    %v50 = vld [vmem:[%s3] sm:$0x1]
    %s51 = sld [smem:[#allocation2]]
    %v52 = vpack.c.bf16 %v49, %v48
    %v53 = vld [vmem:[#allocation6] sm:$0xf]
    %v54 = vld [vmem:[#allocation6 + $0x4] sm:$0xf]
    %v55 = vld [vmem:[#allocation6 + $0x8] sm:$0xf]
    %v56 = vld [vmem:[#allocation6 + $0xc] sm:$0xf]
    %v57 = vld [vmem:[#allocation6 + $0x10] sm:$0xf]
    %v58 = vld [vmem:[#allocation6 + $0x14] sm:$0xf]
    %v59 = vld [vmem:[#allocation6 + $0x18] sm:$0xf]
    %v60 = vld [vmem:[#allocation6 + $0x1c] sm:$0xf]
    %v61 = vld [vmem:[#allocation6 + $0x20] sm:$0xf]
    %v62 = vld [vmem:[#allocation6 + $0x24] sm:$0xf]
    %v63 = vld [vmem:[#allocation6 + $0x28] sm:$0xf]
    %v64 = vld [vmem:[#allocation6 + $0x2c] sm:$0xf]
    %v65 = vld [vmem:[#allocation6 + $0x30] sm:$0xf]
    %v66 = vld [vmem:[#allocation6 + $0x34] sm:$0xf]
    %v67 = vld [vmem:[#allocation6 + $0x38] sm:$0xf]
    %v68 = vld [vmem:[#allocation6 + $0x3c] sm:$0xf]
    %v85 = vunpack.c.l.b16 %v53
    %v86 = vunpack.c.l.b16 %v54
    %v87 = vunpack.c.l.b16 %v55
    %v88 = vunpack.c.l.b16 %v56
    %v89 = vunpack.c.l.b16 %v57
    %v90 = vunpack.c.l.b16 %v58
    %v91 = vunpack.c.l.b16 %v59
    %v92 = vunpack.c.l.b16 %v60
    %v93 = vunpack.c.l.b16 %v61
    %v94 = vunpack.c.l.b16 %v62
    %v95 = vunpack.c.l.b16 %v63
    %v96 = vunpack.c.l.b16 %v64
    %v97 = vunpack.c.l.b16 %v65
    %v98 = vunpack.c.l.b16 %v66
    %v99 = vunpack.c.l.b16 %v67
    %v100 = vunpack.c.l.b16 %v68
    %v101 = vpack.c.b16 %v86, %v85
    %v102 = vpack.c.b16 %v88, %v87
    %v103 = vpack.c.b16 %v90, %v89
    %v104 = vpack.c.b16 %v92, %v91
    %v105 = vpack.c.b16 %v94, %v93
    %v106 = vpack.c.b16 %v96, %v95
    %v107 = vpack.c.b16 %v98, %v97
    %v108 = vpack.c.b16 %v100, %v99
    %117 = vmatprep.subr.bf16.mxu0 0
    %118 = vmatpush1.bf16.msra.mxu0 %v108
    %119 = vmatprep.subr.bf16.mxu0 0
    %120 = vmatpush1.bf16.msra.mxu0 %v107
    %121 = vmatprep.subr.bf16.mxu0 0
    %122 = vmatpush1.bf16.msra.mxu0 %v106
    %123 = vmatprep.subr.bf16.mxu0 0
    %124 = vmatpush1.bf16.msra.mxu0 %v105
    %125 = vmatprep.subr.bf16.mxu0 0
    %126 = vmatpush1.bf16.msra.mxu0 %v104
    %127 = vmatprep.subr.bf16.mxu0 0
    %128 = vmatpush1.bf16.msra.mxu0 %v103
    %129 = vmatprep.subr.bf16.mxu0 0
    %130 = vmatpush1.bf16.msra.mxu0 %v102
    %131 = vmatprep.subr.bf16.mxu0 0
    %132 = vmatpush1.bf16.msra.mxu0 %v101
    %133 = vmatprep.subr.bf16.mxu0 0
    %134 = vmatpush2.bf16.msra.mxu0 0
    %135 = vmatprep.subr.bf16.mxu0 0
    %136 = vmatpush2.bf16.msra.mxu0 0
    %137 = vmatprep.subr.bf16.mxu0 0
    %138 = vmatpush2.bf16.msra.mxu0 0
    %139 = vmatprep.subr.bf16.mxu0 0
    %140 = vmatpush2.bf16.msra.mxu0 0
    %141 = vmatprep.subr.bf16.mxu0 0
    %142 = vmatpush2.bf16.msra.mxu0 0
    %143 = vmatprep.subr.bf16.mxu0 0
    %144 = vmatpush2.bf16.msra.mxu0 0
    %145 = vmatprep.subr.bf16.mxu0 0
    %146 = vmatpush2.bf16.msra.mxu0 0
    %147 = vmatprep.subr.bf16.mxu0 0
    %148 = vmatpush2.bf16.msra.mxu0 0
    %149 = vmatprep.mubr.bf16.mxu0 0
    %150 = vmatmul.mubr.bf16.gmra.mxu0 %v52
    %v151 = vpop.f32.mrf.mxu0
    %v152 = vadd.f32 0.0, %v151
    %v153 = vpop.f32.mrf.mxu0
    %v154 = vpop.f32.mrf.mxu0
    %v155 = vadd.f32 0.0, %v154
    %v156 = vpop.f32.mrf.mxu0
    %157 = vdwg.mxu0
    %v158 = vmul.f32 %v48, %v48
    %v159 = vmul.f32 %v49, %v49
    %160 = vadd.xlane.f32.xlu0 %v158
    %v161 = vpop.xlane.xlu0 %160
    %162 = vadd.xlane.f32.xlu0 %v159
    %v163 = vpop.xlane.xlu0 %162
    %v164 = vmul.f32 %v152, %v152
    %v165 = vmul.f32 %v155, %v155
    %166 = vadd.xlane.f32.xlu0 %v164
    %v167 = vpop.xlane.xlu0 %166
    %168 = vadd.xlane.f32.xlu0 %v165
    %v169 = vpop.xlane.xlu0 %168
    %v171 = vlaneseq
    %v172 = vshrl.u32 %v171, 7
    %v173 = vsub.s32 0, %v172
    %v174 = vrot.slane %v50, %v173
    %v176 = vmul.f32 %v152, %v174
    %v177 = vmul.f32 %v155, %v174
    %178 = vadd.xlane.f32.xlu0 %v176
    %v179 = vpop.xlane.xlu0 %178
    %180 = vadd.xlane.f32.xlu0 %v177
    %v181 = vpop.xlane.xlu0 %180
    %v182 = vmax.f32 %v161, 1e-30
    %v183 = vmax.f32 %v163, 1e-30
    %v184 = vrsqrt.pop %v182
    %v185 = vmul.f32 %v182, %v184
    %vm186 = vcmp.eq.f32.partialorder %v182, inf
    %v187 = vsel %vm186, %v182, %v185
    %vm188 = vcmp.eq.f32.partialorder %v182, 0.0
    %v189 = vand.u32 %v182, 2147483648
    %v190 = vsel %vm188, %v189, %v187
    %v191 = vrsqrt.pop %v183
    %v192 = vmul.f32 %v183, %v191
    %vm193 = vcmp.eq.f32.partialorder %v183, inf
    %v194 = vsel %vm193, %v183, %v192
    %vm195 = vcmp.eq.f32.partialorder %v183, 0.0
    %v196 = vand.u32 %v183, 2147483648
    %v197 = vsel %vm195, %v196, %v194
    %v198 = vmax.f32 %v167, 1e-30
    %v199 = vmax.f32 %v169, 1e-30
    %v200 = vrsqrt.pop %v198
    %v201 = vmul.f32 %v198, %v200
    %vm202 = vcmp.eq.f32.partialorder %v198, inf
    %v203 = vsel %vm202, %v198, %v201
    %vm204 = vcmp.eq.f32.partialorder %v198, 0.0
    %v205 = vand.u32 %v198, 2147483648
    %v206 = vsel %vm204, %v205, %v203
    %v207 = vrsqrt.pop %v199
    %v208 = vmul.f32 %v199, %v207
    %vm209 = vcmp.eq.f32.partialorder %v199, inf
    %v210 = vsel %vm209, %v199, %v208
    %vm211 = vcmp.eq.f32.partialorder %v199, 0.0
    %v212 = vand.u32 %v199, 2147483648
    %v213 = vsel %vm211, %v212, %v210
    %v214 = vrcp.pop %v190
    %v215 = vmul.f32 %v206, %v214
    %v216 = vrcp.pop %v197
    %v217 = vmul.f32 %v213, %v216
    %v218 = vmax.f32 %v190, -0.9999999
    %v219 = vmax.f32 %v197, -0.9999999
    %v220 = vmin.f32 %v218, 0.9999999
    %v221 = vmin.f32 %v219, 0.9999999
    %v222 = vadd.f32 %v220, 1.0
    %v223 = vlog2.pop %v222
    %v224 = vmul.f32 %v223, 0.6931472
    %v225 = vmul.f32 -0.5, %v220
    %v226 = vadd.f32 %v225, 1.0
    %v227 = vmul.f32 %v226, %v220
    %v228 = vand.u32 2147483647, %v220
    %vm229 = vcmp.lt.f32.partialorder %v228, 0.0004427343
    %v230 = vsel %vm229, %v227, %v224
    %v231 = vadd.f32 %v221, 1.0
    %v232 = vlog2.pop %v231
    %v233 = vmul.f32 %v232, 0.6931472
    %v234 = vmul.f32 -0.5, %v221
    %v235 = vadd.f32 %v234, 1.0
    %v236 = vmul.f32 %v235, %v221
    %v237 = vand.u32 2147483647, %v221
    %vm238 = vcmp.lt.f32.partialorder %v237, 0.0004427343
    %v239 = vsel %vm238, %v236, %v233
    %v240 = vsub.f32 0.0, %v220
    %v241 = vsub.f32 0.0, %v221
    %v242 = vadd.f32 %v240, 1.0
    %v243 = vlog2.pop %v242
    %v244 = vmul.f32 %v243, 0.6931472
    %v245 = vmul.f32 -0.5, %v240
    %v246 = vadd.f32 %v245, 1.0
    %v247 = vmul.f32 %v246, %v240
    %v248 = vand.u32 2147483647, %v240
    %vm249 = vcmp.lt.f32.partialorder %v248, 0.0004427343
    %v250 = vsel %vm249, %v247, %v244
    %v251 = vadd.f32 %v241, 1.0
    %v252 = vlog2.pop %v251
    %v253 = vmul.f32 %v252, 0.6931472
    %v254 = vmul.f32 -0.5, %v241
    %v255 = vadd.f32 %v254, 1.0
    %v256 = vmul.f32 %v255, %v241
    %v257 = vand.u32 2147483647, %v241
    %vm258 = vcmp.lt.f32.partialorder %v257, 0.0004427343
    %v259 = vsel %vm258, %v256, %v253
    %v260 = vsub.f32 %v230, %v250
    %v261 = vsub.f32 %v239, %v259
    %v262 = vmul.f32 %v260, 0.5
    %v263 = vmul.f32 %v261, 0.5
    %v264 = vmul.f32 %v215, %v262
    %v265 = vmul.f32 %v217, %v263
    %v266 = vtanh.pop %v264
    %v267 = vtanh.pop %v265
    %v268 = vrcp.pop %v206
    %v269 = vmul.f32 %v266, %v268
    %v270 = vrcp.pop %v213
    %v271 = vmul.f32 %v267, %v270
    %vm272 = vcmp.eq.f32.partialorder %v167, 0.0
    %vm273 = vcmp.eq.f32.partialorder %v169, 0.0
    %v274 = vsel %vm272, 0.0, %v269
    %v275 = vsel %vm273, 0.0, %v271
    %v276 = vand.u32 2147483647, %v274
    %v277 = vand.u32 2147483647, %v275
    %v278 = vmul.f32 %v276, %v206
    %v279 = vmul.f32 %v277, %v213
    %vm280 = vcmp.gt.f32.partialorder %v278, 0.99999
    %vm281 = vcmp.gt.f32.partialorder %v279, 0.99999
    %v282 = vmax.f32 %v278, 1e-15
    %v283 = vmax.f32 %v279, 1e-15
    %v284 = vrcp.pop %v282
    %v285 = vmul.f32 0.99999, %v284
    %v286 = vrcp.pop %v283
    %v287 = vmul.f32 0.99999, %v286
    %v288 = vsel %vm280, %v285, 1.0
    %v289 = vsel %vm281, %v287, 1.0
    %v290 = vmul.f32 %v274, %v288
    %v291 = vmul.f32 %v275, %v289
    %v292 = vmul.f32 %v278, %v288
    %v293 = vmul.f32 %v279, %v289
    %v294 = vmul.f32 %v292, %v292
    %v295 = vmul.f32 %v293, %v293
    %v296 = vmul.f32 %v290, %v179
    %v297 = vmul.f32 %v291, %v181
    %v298 = vmul.f32 %v296, 2.0
    %v299 = vmul.f32 %v297, 2.0
    %v300 = vadd.f32 %v298, 1.0
    %v301 = vadd.f32 %v299, 1.0
    %v302 = vstv %s51
    %v303 = vmul.f32 %v294, %v302
    %v304 = vmul.f32 %v295, %v302
    %v305 = vadd.f32 %v300, %v303
    %v306 = vadd.f32 %v301, %v304
    %v307 = vmax.f32 %v305, 1e-15
    %v308 = vmax.f32 %v306, 1e-15
    %v309 = vrcp.pop %v307
    %v310 = vmul.f32 1.0, %v309
    %v311 = vrcp.pop %v308
    %v312 = vmul.f32 1.0, %v311
    %v313 = vadd.f32 %v300, %v302
    %v314 = vadd.f32 %v301, %v302
    %v315 = vmul.f32 %v313, %v290
    %v316 = vmul.f32 %v314, %v291
    %v317 = vmul.f32 %v315, %v310
    %v318 = vmul.f32 %v316, %v312
    %v319 = vsub.f32 1.0, %v294
    %v320 = vsub.f32 1.0, %v295
    %v321 = vmul.f32 %v319, %v310
    %v322 = vmul.f32 %v320, %v312
    %v323 = vmul.f32 %v317, %v317
    %v324 = vmul.f32 %v318, %v318
    %v325 = vmul.f32 %v323, %v167
    %v326 = vmul.f32 %v324, %v169
    %v327 = vmul.f32 %v317, %v321
    %v328 = vmul.f32 %v318, %v322
    %v329 = vmul.f32 %v327, 2.0
    %v330 = vmul.f32 %v328, 2.0
    %v331 = vmul.f32 %v329, %v179
    %v332 = vmul.f32 %v330, %v181
    %v333 = vadd.f32 %v325, %v331
    %v334 = vadd.f32 %v326, %v332
    %v335 = vmul.f32 %v321, %v321
    %v336 = vmul.f32 %v322, %v322
    %v337 = vmul.f32 %v335, %v302
    %v338 = vmul.f32 %v336, %v302
    %v339 = vadd.f32 %v333, %v337
    %v340 = vadd.f32 %v334, %v338
    %v341 = vmax.f32 %v339, 1e-30
    %v342 = vmax.f32 %v340, 1e-30
    %v343 = vrsqrt.pop %v341
    %v344 = vmul.f32 %v341, %v343
    %vm345 = vcmp.eq.f32.partialorder %v341, inf
    %v346 = vsel %vm345, %v341, %v344
    %vm347 = vcmp.eq.f32.partialorder %v341, 0.0
    %v348 = vand.u32 %v341, 2147483648
    %v349 = vsel %vm347, %v348, %v346
    %v350 = vrsqrt.pop %v342
    %v351 = vmul.f32 %v342, %v350
    %vm352 = vcmp.eq.f32.partialorder %v342, inf
    %v353 = vsel %vm352, %v342, %v351
    %vm354 = vcmp.eq.f32.partialorder %v342, 0.0
    %v355 = vand.u32 %v342, 2147483648
    %v356 = vsel %vm354, %v355, %v353
    %vm357 = vcmp.gt.f32.partialorder %v349, 0.99999
    %vm358 = vcmp.gt.f32.partialorder %v356, 0.99999
    %v359 = vrcp.pop %v349
    %v360 = vmul.f32 0.99999, %v359
    %v361 = vrcp.pop %v356
    %v362 = vmul.f32 0.99999, %v361
    %v363 = vsel %vm357, %v360, 1.0
    %v364 = vsel %vm358, %v362, 1.0
    %v365 = vmul.f32 %v317, %v363
    %v366 = vmul.f32 %v318, %v364
    %v367 = vmul.f32 %v321, %v363
    %v368 = vmul.f32 %v322, %v364
    %v369 = vmul.f32 %v365, %v152
    %v370 = vmul.f32 %v366, %v155
    %v371 = vmul.f32 %v367, %v174
    %v372 = vmul.f32 %v368, %v174
    %v373 = vadd.f32 %v369, %v371
    %v374 = vadd.f32 %v370, %v372
    %375 = vst [vmem:[#allocation8] sm:$0xff] %v373
    %376 = vst [vmem:[#allocation8 + $0x8] sm:$0xff] %v374
    // Predicated region
    $region26: #{tpu_custom_call.1} parent=1 // pred_check
      _
    $region27: #{tpu_custom_call.1} parent=1 // pred_check_branch
      %378 = sbr.rel (0) target = $region29
    $region28: #{tpu_custom_call.1} parent=1 // pred_region
      %s380 = ssub.s32 256, 256
      %381 = vsyncadd [#allocation5], %s380
      %s382 = sshll.u32 [#allocation8], 4
      %s383 = int_to_ptr.vmem [resolvable:$true] %s382
      %388 = dma.vmem_to_hbm [thread:$0]  %s383, 256, %s4, [#allocation5], 128, 128, 8
    $region29: #{tpu_custom_call.1} parent=1 // pred_fallthru
      _
    // Predicated region
    $region30: #{tpu_custom_call.1} parent=1 // pred_check
      _
    $region31: #{tpu_custom_call.1} parent=1 // pred_check_branch
      %390 = sbr.rel (0) target = $region33
    $region32: #{tpu_custom_call.1} parent=1 // pred_region
      %391 = dma.done [#allocation5], 256
    $region33: #{tpu_custom_call.1} parent=1 // pred_fallthru
      _
    %392 = vsyncpa [#allocation4], 1
    %393 = vsyncpa [#allocation7], 1
    %394 = vsyncpa [#allocation5], 1

</llo_original>
